<compile_context>
chip_gen: v7x
topology: tpu7x:2x2x1
jax: 0.10.0
libtpu: 0.0.40
codegen_flags: <defaults>
</compile_context>

<pallas_src>
import jax
import jax.numpy as jnp
from jax.experimental import pallas as pl
from jax.experimental.pallas import tpu as pltpu


def _round_up(x, m):
    return ((x + m - 1) // m) * m


def _pick_tile(dim, target, align):
    """Largest t <= target with t % align == 0 and dim % t == 0, else full dim."""
    if dim % align != 0:
        return dim
    t = min(target, dim)
    t -= t % align
    while t >= align:
        if dim % t == 0:
            return t
        t -= align
    return dim


def _vmem_capacity_bytes():
    """Physical VMEM capacity (per core); conservative 64 MiB fallback."""
    try:
        info = pltpu.get_tpu_info()
        cap = getattr(info, "vmem_capacity_bytes", None)
        if cap:
            return int(cap)
    except Exception:
        pass
    return 64 * 1024 * 1024


def swiglu_kernel(a_ref, g_ref, w_ref, b_ref, o_ref, h_ref):
    # a_ref/g_ref: (tm, d_half)   w_ref: (d_half, tn)   b_ref: (1, tn)
    # o_ref: (tm, tn)             h_ref: (tm, d_half) VMEM scratch (matmul dtype)

    # Compute h = silu(gate) * a once per token tile and cache it; all column
    # tiles (j > 0) reuse the cached value.  silu runs in f32 on the VPU/EUP.
    @pl.when(pl.program_id(1) == 0)
    def _():
        a = a_ref[...].astype(jnp.float32)
        g = g_ref[...].astype(jnp.float32)
        h_ref[...] = ((g * jax.nn.sigmoid(g)) * a).astype(h_ref.dtype)

    # MXU matmul in the weight dtype (bf16 if bf16 weights), f32 accumulator.
    acc = jnp.dot(h_ref[...], w_ref[...], preferred_element_type=jnp.float32)
    acc = acc + b_ref[...].astype(jnp.float32)
    o_ref[...] = acc.astype(o_ref.dtype)


def swiglu_pallas(x, w_t, b, *, tm=None, tn=512, matmul_dtype=None):
    """x: (B, S, d_in); w_t: (d_half, d_in) = weight.T; b: (d_in,).

    matmul_dtype: dtype used for the MXU matmul (h and w are cast to it).
    Defaults to w_t.dtype; pass jnp.bfloat16 for the fast path with f32 weights
    (accumulation and bias add stay f32 either way).
    """
    B, S, d_in = x.shape
    assert d_in % 2 == 0, "SwiGLU requires an even last dimension"
    d_half = d_in // 2
    assert w_t.shape == (d_half, d_in)
    M = B * S

    if matmul_dtype is None:
        matmul_dtype = w_t.dtype
    matmul_dtype = jnp.dtype(matmul_dtype)
    w_t = w_t.astype(matmul_dtype)

    x2 = x.reshape(M, d_in)
    b2 = b.reshape(1, d_in)

    vmem_cap = _vmem_capacity_bytes()

    # ---- tile selection -------------------------------------------------
    row_align = 16 if x.dtype == jnp.bfloat16 else 8      # sublane packing
    tn_eff = _pick_tile(d_in, tn, 128)                     # lane-dense out tile

    isz = jnp.dtype(x.dtype).itemsize
    wsz = matmul_dtype.itemsize

    def vmem_usage(tm_):
        act = 2 * 2 * tm_ * d_half * isz       # a + gate tiles, double-buffered
        hsc = tm_ * d_half * wsz               # cached h scratch
        wgt = 2 * d_half * tn_eff * wsz        # weight column, double-buffered
        bia = 2 * 8 * _round_up(tn_eff, 128) * jnp.dtype(b.dtype).itemsize
        outb = 2 * tm_ * tn_eff * isz          # output tile, double-buffered
        f32tmp = 2 * tm_ * d_half * 4          # silu f32 intermediates
        accb = tm_ * tn_eff * 4                # f32 matmul accumulator
        return act + hsc + wgt + bia + outb + f32tmp + accb

    # Token tile: as big as VMEM allows -> fewer full-weight HBM re-reads.
    # 128 MiB parts (v5e/v6e): target 1024 rows; 64 MiB parts (v7x): 512 rows.
    if tm is None:
        tm = 1024 if vmem_cap >= 96 * 1024 * 1024 else 512

    if M < row_align:
        tm_eff = M                              # full-extent block is always legal
    else:
        tm_eff = min(tm, _round_up(M, row_align))
        tm_eff = max(row_align, (tm_eff // row_align) * row_align)
        while tm_eff > row_align and vmem_usage(tm_eff) > int(0.7 * vmem_cap):
            tm_eff = max(row_align, (tm_eff // 2 // row_align) * row_align)

    # Ragged M: no wrapper-side padding — pl.cdiv grid + Pallas masking of the
    # final partial tile (garbage rows only affect rows that are never stored).
    grid = (pl.cdiv(M, tm_eff), pl.cdiv(d_in, tn_eff))

    # a/gate delivered as two lane-dense (tm, d_half) tiles straight from the
    # pipeline DMA: two BlockSpecs over the same HBM array (col-block 0 and 1).
    if d_half % 128 == 0:
        a_spec = pl.BlockSpec((tm_eff, d_half), lambda i, j: (i, 0))
        g_spec = pl.BlockSpec((tm_eff, d_half), lambda i, j: (i, 1))
        a_in, g_in = x2, x2
    else:
        # Unaligned half-width: pre-split in the wrapper so each block spans
        # the full last dim of its array (costs one extra activation copy).
        a_in, g_in = x2[:, :d_half], x2[:, d_half:]
        a_spec = pl.BlockSpec((tm_eff, d_half), lambda i, j: (i, 0))
        g_spec = pl.BlockSpec((tm_eff, d_half), lambda i, j: (i, 0))

    w_spec = pl.BlockSpec((d_half, tn_eff), lambda i, j: (0, j))
    b_spec = pl.BlockSpec((1, tn_eff), lambda i, j: (0, j))
    o_spec = pl.BlockSpec((tm_eff, tn_eff), lambda i, j: (i, j))

    vmem_limit = int(min(max(vmem_usage(tm_eff) + (16 << 20), 32 << 20),
                         int(0.9 * vmem_cap)))

    out = pl.pallas_call(
        swiglu_kernel,
        out_shape=jax.ShapeDtypeStruct((M, d_in), x.dtype),
        grid_spec=pltpu.PrefetchScalarGridSpec(
            num_scalar_prefetch=0,
            grid=grid,
            in_specs=[a_spec, g_spec, w_spec, b_spec],
            out_specs=o_spec,
            scratch_shapes=[pltpu.VMEM((tm_eff, d_half), matmul_dtype)],
        ),
        compiler_params=pltpu.CompilerParams(
            # j must be 'arbitrary': the cached h scratch is only valid if the
            # core handling a token tile walks j = 0..J-1 in order.  The token
            # axis stays 'parallel' so v7x's two TensorCores split tokens while
            # keeping each core's weight-reuse pattern intact.
            dimension_semantics=("parallel", "arbitrary"),
            vmem_limit_bytes=vmem_limit,
        ),
    )(a_in, g_in, w_t, b2)

    # TODO(synk): add a K ('arbitrary') grid axis with an f32 VMEM accumulator
    # if d_half ever grows past what a (d_half, tn) weight column leaves in VMEM.
    return out.reshape(B, S, d_in)


def swiglu_ref(x, w_t, b):
    d_half = x.shape[-1] // 2
    a, gate = x[..., :d_half], x[..., d_half:]
    h = jax.nn.silu(gate) * a
    return h @ w_t + b


if __name__ == "__main__":
    # Small but TPU-tile-friendly shapes: (batch=2, seq=8, d_in=256).
    B, S, d_in = 2, 8, 256
    d_half = d_in // 2

    key = jax.random.PRNGKey(0)
    kx, kw, kb = jax.random.split(key, 3)

    x = jax.random.normal(kx, (B, S, d_in), dtype=jnp.float32)
    # nn.Linear(d_half, d_in) init: U(-1/sqrt(d_half), 1/sqrt(d_half))
    bound = 1.0 / (d_half ** 0.5)
    w = jax.random.uniform(kw, (d_in, d_half), minval=-bound, maxval=bound,
                           dtype=jnp.float32)               # PyTorch (out, in)
    b = jax.random.uniform(kb, (d_in,), minval=-bound, maxval=bound,
                           dtype=jnp.float32)
    w_t = w.T                                                # (d_half, d_in)

    # f32 path (matches the PyTorch module's numerics tightly).
    out = jax.block_until_ready(swiglu_pallas(x, w_t, b))
    ref = swiglu_ref(x, w_t, b)
    assert out.shape == (B, S, d_in)
    assert jnp.allclose(out, ref, atol=1e-4, rtol=1e-5), float(
        jnp.max(jnp.abs(out - ref)))

    # bf16 MXU path (fast path on real FFN widths); loose tolerance expected.
    x_bf = x.astype(jnp.bfloat16)
    out_bf = jax.block_until_ready(
        swiglu_pallas(x_bf, w_t, b, matmul_dtype=jnp.bfloat16))
    ref_bf = swiglu_ref(x_bf.astype(jnp.float32), w_t, b)
    assert jnp.allclose(out_bf.astype(jnp.float32), ref_bf,
                        atol=1e-1, rtol=5e-2)

    print("KERNEL_OK")
</pallas_src>

<mosaic_0001>
module attributes {stable_mosaic.version = 11 : i64} {
  func.func @swiglu_kernel(%arg0: i32, %arg1: i32, %arg2: memref<16x128xf32, #tpu.memory_space<vmem>>, %arg3: memref<16x128xf32, #tpu.memory_space<vmem>>, %arg4: memref<128x256xf32, #tpu.memory_space<vmem>>, %arg5: memref<1x256xf32, #tpu.memory_space<vmem>>, %arg6: memref<16x256xf32, #tpu.memory_space<vmem>>, %arg7: memref<16x128xf32, #tpu.memory_space<vmem>>) attributes {dimension_semantics = [#tpu.dimension_semantics<parallel>, #tpu.dimension_semantics<arbitrary>], iteration_bounds = array<i64: 1, 1>, scalar_prefetch = 0 : i64, scratch_operands = 1 : i64, tpu.core_type = #tpu.core_type<tc>, window_params = [{transform_indices = @transform_0, window_bounds = array<i64: 16, 128>}, {transform_indices = @transform_1, window_bounds = array<i64: 16, 128>}, {transform_indices = @transform_2, window_bounds = array<i64: 128, 256>}, {transform_indices = @transform_3, window_bounds = array<i64: 1, 256>}, {transform_indices = @transform_4, window_bounds = array<i64: 16, 256>}]} {
    %c0_i32 = arith.constant 0 : i32
    %0 = arith.cmpi eq, %arg1, %c0_i32 : i32
    %1 = arith.extui %0 : i1 to i32
    %c0_i32_0 = arith.constant 0 : i32
    %2 = arith.cmpi ne, %1, %c0_i32_0 : i32
    scf.if %2 {
      %c0_8 = arith.constant 0 : index
      %c0_9 = arith.constant 0 : index
      %10 = vector.load %arg2[%c0_8, %c0_9] : memref<16x128xf32, #tpu.memory_space<vmem>>, vector<16x128xf32>
      %c0_10 = arith.constant 0 : index
      %c0_11 = arith.constant 0 : index
      %11 = vector.load %arg3[%c0_10, %c0_11] : memref<16x128xf32, #tpu.memory_space<vmem>>, vector<16x128xf32>
      %12 = arith.negf %11 : vector<16x128xf32>
      %13 = math.exp %12 : vector<16x128xf32>
      %cst_12 = arith.constant 1.000000e+00 : f32
      %14 = vector.broadcast %cst_12 : f32 to vector<16x128xf32>
      %15 = arith.addf %14, %13 : vector<16x128xf32>
      %16 = arith.divf %14, %15 : vector<16x128xf32>
      %17 = arith.mulf %11, %16 : vector<16x128xf32>
      %18 = arith.mulf %17, %10 : vector<16x128xf32>
      %c0_13 = arith.constant 0 : index
      %c0_14 = arith.constant 0 : index
      %19 = vector.load %arg7[%c0_13, %c0_14] : memref<16x128xf32, #tpu.memory_space<vmem>>, vector<16x128xf32>
      tpu.vector_store %arg7[%c0_13, %c0_14], %18 {strides = array<i32>} : memref<16x128xf32, #tpu.memory_space<vmem>>, vector<16x128xf32>,
    } else {
    }
    %c0 = arith.constant 0 : index
    %c0_1 = arith.constant 0 : index
    %3 = vector.load %arg7[%c0, %c0_1] : memref<16x128xf32, #tpu.memory_space<vmem>>, vector<16x128xf32>
    %c0_2 = arith.constant 0 : index
    %c0_3 = arith.constant 0 : index
    %4 = vector.load %arg4[%c0_2, %c0_3] : memref<128x256xf32, #tpu.memory_space<vmem>>, vector<128x256xf32>
    %cst = arith.constant dense<0.000000e+00> : vector<16x256xf32>
    %5 = tpu.matmul %3, %4, %cst {dimension_numbers = #tpu.dot_dimension_numbers<[1], [0], [0], [1], [0, 0, 1, 1], [], []>} : vector<16x128xf32>, vector<128x256xf32>, vector<16x256xf32> -> vector<16x256xf32>
    %c0_4 = arith.constant 0 : index
    %c0_5 = arith.constant 0 : index
    %6 = vector.load %arg5[%c0_4, %c0_5] : memref<1x256xf32, #tpu.memory_space<vmem>>, vector<1x256xf32>
    %7 = vector.broadcast %6 : vector<1x256xf32> to vector<16x256xf32>
    %8 = arith.addf %5, %7 : vector<16x256xf32>
    %c0_6 = arith.constant 0 : index
    %c0_7 = arith.constant 0 : index
    %9 = vector.load %arg6[%c0_6, %c0_7] : memref<16x256xf32, #tpu.memory_space<vmem>>, vector<16x256xf32>
    tpu.vector_store %arg6[%c0_6, %c0_7], %8 {strides = array<i32>} : memref<16x256xf32, #tpu.memory_space<vmem>>, vector<16x256xf32>,
    return
  }
  func.func @transform_0(%arg0: i32, %arg1: i32) -> (i32, i32) {
    %c0_i32 = arith.constant 0 : i32
    %c0_i32_0 = arith.constant 0 : i32
    return %arg0, %c0_i32 : i32, i32
  }
  func.func @transform_1(%arg0: i32, %arg1: i32) -> (i32, i32) {
    %c1_i32 = arith.constant 1 : i32
    %c0_i32 = arith.constant 0 : i32
    return %arg0, %c1_i32 : i32, i32
  }
  func.func @transform_2(%arg0: i32, %arg1: i32) -> (i32, i32) {
    %c0_i32 = arith.constant 0 : i32
    %c0_i32_0 = arith.constant 0 : i32
    return %c0_i32, %arg1 : i32, i32
  }
  func.func @transform_3(%arg0: i32, %arg1: i32) -> (i32, i32) {
    %c0_i32 = arith.constant 0 : i32
    %c0_i32_0 = arith.constant 0 : i32
    return %c0_i32, %arg1 : i32, i32
  }
  func.func @transform_4(%arg0: i32, %arg1: i32) -> (i32, i32) {
    %c0_i32 = arith.constant 0 : i32
    return %arg0, %arg1 : i32, i32
  }
}

</mosaic_0001>

<llo_original>
// kernel: tpu_custom_call.1
$region0: #{tpu_custom_call.1}
  #allocation0 [shape = 'u32[]', space=smem, size = 0x4, offset = 0x4, fixed_abs, tag = 'smem constant byte address 0x4 - core index']
  #allocation1 [shape = 'u32[144,128]{1,0:T(1,128)}', space=vmem, size = 0x12000, scoped, tag = 'internal scratch']
  #allocation2 [shape = 'f32[16,128]{1,0:T(8,128)}', space=vmem, size = 0x2000, scoped, tag = 'scratch operand']
  %s0 = inlined_call_operand.hbm [shape: f32[16,256], index: 0, kind: input, shape index: {}]
  %s1 = inlined_call_operand.hbm [shape: f32[16,256], index: 1, kind: input, shape index: {}]
  %s2 = inlined_call_operand.hbm [shape: f32[128,256], index: 2, kind: input, shape index: {}]
  %s3 = inlined_call_operand.vmem [shape: f32[1,256], index: 3, kind: input, shape index: {}]
  %s4 = inlined_call_operand.hbm [shape: f32[16,256], index: 4, kind: output, shape index: {}]
  %s5 = sld [smem:[#allocation0]]
  $region42: #{tpu_custom_call.1} parent=0
    _
  %s7 = ssub.s32 1, %s5
  %s8 = scalar_select 0, %s7, %s5
  $region1: #{tpu_custom_call.1} parent=0
    #allocation3 [shape = 'u8[8192]{0}', space=vmem, size = 0x2000, scoped, tag = 'input window, operand 0, single buffered']
    #allocation4 [shape = 's32[1]{0}', space=sflag, size = 0x4, scoped, tag = 'scoped memory for tpu_custom_call.1']
    #allocation5 [shape = 's32[1]{0}', space=sflag, size = 0x4, scoped, tag = 'scoped memory for tpu_custom_call.1']
    #allocation6 [shape = 'u8[8192]{0}', space=vmem, size = 0x2000, scoped, tag = 'input window, operand 1, single buffered']
    #allocation7 [shape = 's32[1]{0}', space=sflag, size = 0x4, scoped, tag = 'scoped memory for tpu_custom_call.1']
    #allocation8 [shape = 'u8[131072]{0}', space=vmem, size = 0x20000, scoped, tag = 'input window, operand 2, single buffered']
    #allocation9 [shape = 'u8[16384]{0}', space=vmem, size = 0x4000, scoped, tag = 'output window, operand 0, single buffered']
    %9 = vsyncpa [#allocation4], 0
    %10 = vsyncpa [#allocation7], 0
    %11 = vsyncpa [#allocation5], 0
    // Predicated region
    $region2: #{tpu_custom_call.1} parent=1 // pred_check
      _
    $region3: #{tpu_custom_call.1} parent=1 // pred_check_branch
      %13 = sbr.rel (0) target = $region5
    $region4: #{tpu_custom_call.1} parent=1 // pred_region
      %s15 = ssub.s32 256, 256
      %16 = vsyncadd [#allocation4], %s15
      %s17 = sshll.u32 [#allocation3], 4
      %s18 = int_to_ptr.vmem [resolvable:$true] %s17
      %23 = dma.hbm_to_vmem [thread:$0]  %s0, 256, %s18, [#allocation4], 256, 128, 8
    $region5: #{tpu_custom_call.1} parent=1 // pred_fallthru
      _
    // Predicated region
    $region6: #{tpu_custom_call.1} parent=1 // pred_check
      _
    $region7: #{tpu_custom_call.1} parent=1 // pred_check_branch
      %25 = sbr.rel (0) target = $region9
    $region8: #{tpu_custom_call.1} parent=1 // pred_region
      %s27 = ssub.s32 256, 256
      %28 = vsyncadd [#allocation7], %s27
      %s29 = scalar_lea.hbm %s1, 128
      %s30 = sshll.u32 [#allocation6], 4
      %s31 = int_to_ptr.vmem [resolvable:$true] %s30
      %36 = dma.hbm_to_vmem [thread:$0]  %s29, 256, %s31, [#allocation7], 256, 128, 8
    $region9: #{tpu_custom_call.1} parent=1 // pred_fallthru
      _
    // Predicated region
    $region10: #{tpu_custom_call.1} parent=1 // pred_check
      _
    $region11: #{tpu_custom_call.1} parent=1 // pred_check_branch
      %38 = sbr.rel (0) target = $region13
    $region12: #{tpu_custom_call.1} parent=1 // pred_region
      %s40 = ssub.s32 4096, 4096
      %41 = vsyncadd [#allocation7], %s40
      %s42 = sshll.u32 [#allocation8], 4
      %s43 = int_to_ptr.vmem [resolvable:$true] %s42
      %48 = dma.hbm_to_vmem [thread:$0]  %s2, 4096, %s43, [#allocation7], 256, 256, 16
    $region13: #{tpu_custom_call.1} parent=1 // pred_fallthru
      _
    // Predicated region
    $region14: #{tpu_custom_call.1} parent=1 // pred_check
      _
    $region15: #{tpu_custom_call.1} parent=1 // pred_check_branch
      %50 = sbr.rel (0) target = $region17
    $region16: #{tpu_custom_call.1} parent=1 // pred_region
      _
    $region17: #{tpu_custom_call.1} parent=1 // pred_fallthru
      _
    // Predicated region
    $region18: #{tpu_custom_call.1} parent=1 // pred_check
      _
    $region19: #{tpu_custom_call.1} parent=1 // pred_check_branch
      %52 = sbr.rel (0) target = $region21
    $region20: #{tpu_custom_call.1} parent=1 // pred_region
      %53 = dma.done [#allocation4], 256
    $region21: #{tpu_custom_call.1} parent=1 // pred_fallthru
      _
    // Predicated region
    $region22: #{tpu_custom_call.1} parent=1 // pred_check
      _
    $region23: #{tpu_custom_call.1} parent=1 // pred_check_branch
      %55 = sbr.rel (0) target = $region25
    $region24: #{tpu_custom_call.1} parent=1 // pred_region
      %56 = dma.done [#allocation7], 256
    $region25: #{tpu_custom_call.1} parent=1 // pred_fallthru
      _
    // Predicated region
    $region26: #{tpu_custom_call.1} parent=1 // pred_check
      _
    $region27: #{tpu_custom_call.1} parent=1 // pred_check_branch
      %58 = sbr.rel (0) target = $region29
    $region28: #{tpu_custom_call.1} parent=1 // pred_region
      %59 = dma.done [#allocation7], 4096
    $region29: #{tpu_custom_call.1} parent=1 // pred_fallthru
      _
    %p60 = scmp.eq.s32.totalorder 0, 0
    // Predicated region
    $region30: #{tpu_custom_call.1} parent=1 // pred_check
      %p61 = pneg %p60
    $region31: #{tpu_custom_call.1} parent=1 // pred_check_branch
      %63 = sbr.rel (%p61) target = $region33
    $region32: #{tpu_custom_call.1} parent=1 // pred_region
      %v64 = vld [vmem:[#allocation3] sm:$0xff]
      %v65 = vld [vmem:[#allocation3 + $0x8] sm:$0xff]
      %v66 = vld [vmem:[#allocation6] sm:$0xff]
      %v67 = vld [vmem:[#allocation6 + $0x8] sm:$0xff]
      %v68 = vxor.u32 %v66, 2147483648
      %v69 = vxor.u32 %v67, 2147483648
      %v70 = vmul.f32 %v68, 1.442695
      %v71 = vpow.pop %v70
      %v72 = vmul.f32 %v69, 1.442695
      %v73 = vpow.pop %v72
      %v74 = vadd.f32 %v71, 1.0
      %v75 = vadd.f32 %v73, 1.0
      %v76 = vrcp.pop %v74
      %v77 = vmul.f32 1.0, %v76
      %v78 = vrcp.pop %v75
      %v79 = vmul.f32 1.0, %v78
      %v80 = vmul.f32 %v66, %v77
      %v81 = vmul.f32 %v67, %v79
      %v82 = vmul.f32 %v80, %v64
      %v83 = vmul.f32 %v81, %v65
      %84 = vst [vmem:[#allocation2] sm:$0xff] %v82
      %85 = vst [vmem:[#allocation2 + $0x8] sm:$0xff] %v83
    $region33: #{tpu_custom_call.1} parent=1 // pred_fallthru
      _
    %v86 = vld [vmem:[#allocation2] sm:$0xff]
    %v87 = vld [vmem:[#allocation2 + $0x8] sm:$0xff]
    %v88 = vld [vmem:[#allocation8] sm:$0xff]
    %v89 = vld [vmem:[#allocation8 + $0x8] sm:$0xff]
    %v90 = vld [vmem:[#allocation8 + $0x10] sm:$0xff]
    %v91 = vld [vmem:[#allocation8 + $0x18] sm:$0xff]
    %v92 = vld [vmem:[#allocation8 + $0x20] sm:$0xff]
    %v93 = vld [vmem:[#allocation8 + $0x28] sm:$0xff]
    %v94 = vld [vmem:[#allocation8 + $0x30] sm:$0xff]
    %v95 = vld [vmem:[#allocation8 + $0x38] sm:$0xff]
    %v96 = vld [vmem:[#allocation8 + $0x40] sm:$0xff]
    %v97 = vld [vmem:[#allocation8 + $0x48] sm:$0xff]
    %v98 = vld [vmem:[#allocation8 + $0x50] sm:$0xff]
    %v99 = vld [vmem:[#allocation8 + $0x58] sm:$0xff]
    %v100 = vld [vmem:[#allocation8 + $0x60] sm:$0xff]
    %v101 = vld [vmem:[#allocation8 + $0x68] sm:$0xff]
    %v102 = vld [vmem:[#allocation8 + $0x70] sm:$0xff]
    %v103 = vld [vmem:[#allocation8 + $0x78] sm:$0xff]
    %v104 = vld [vmem:[#allocation8 + $0x80] sm:$0xff]
    %v105 = vld [vmem:[#allocation8 + $0x88] sm:$0xff]
    %v106 = vld [vmem:[#allocation8 + $0x90] sm:$0xff]
    %v107 = vld [vmem:[#allocation8 + $0x98] sm:$0xff]
    %v108 = vld [vmem:[#allocation8 + $0xa0] sm:$0xff]
    %v109 = vld [vmem:[#allocation8 + $0xa8] sm:$0xff]
    %v110 = vld [vmem:[#allocation8 + $0xb0] sm:$0xff]
    %v111 = vld [vmem:[#allocation8 + $0xb8] sm:$0xff]
    %v112 = vld [vmem:[#allocation8 + $0xc0] sm:$0xff]
    %v113 = vld [vmem:[#allocation8 + $0xc8] sm:$0xff]
    %v114 = vld [vmem:[#allocation8 + $0xd0] sm:$0xff]
    %v115 = vld [vmem:[#allocation8 + $0xd8] sm:$0xff]
    %v116 = vld [vmem:[#allocation8 + $0xe0] sm:$0xff]
    %v117 = vld [vmem:[#allocation8 + $0xe8] sm:$0xff]
    %v118 = vld [vmem:[#allocation8 + $0xf0] sm:$0xff]
    %v119 = vld [vmem:[#allocation8 + $0xf8] sm:$0xff]
    %v120 = vld [vmem:[%s3] sm:$0x3]
    %v122 = vlaneseq
    %v123 = vshrl.u32 %v122, 7
    %v124 = vsub.s32 0, %v123
    %v125 = vrot.slane %v120, %v124
    %v126 = vlaneseq
    %v127 = vshrl.u32 %v126, 7
    %v128 = vsub.s32 1, %v127
    %v129 = vrot.slane %v120, %v128
    %132 = vmatprep.subr.mxu0 %v89
    %133 = vmatpush1.msra.mxu0 %v88
    %134 = vmatprep.subr.mxu0 %v91
    %135 = vmatpush1.msra.mxu0 %v90
    %136 = vmatprep.subr.mxu0 %v93
    %137 = vmatpush1.msra.mxu0 %v92
    %138 = vmatprep.subr.mxu0 %v95
    %139 = vmatpush1.msra.mxu0 %v94
    %140 = vmatprep.subr.mxu0 %v97
    %141 = vmatpush1.msra.mxu0 %v96
    %142 = vmatprep.subr.mxu0 %v99
    %143 = vmatpush1.msra.mxu0 %v98
    %144 = vmatprep.subr.mxu0 %v101
    %145 = vmatpush1.msra.mxu0 %v100
    %146 = vmatprep.subr.mxu0 %v103
    %147 = vmatpush1.msra.mxu0 %v102
    %148 = vmatprep.subr.mxu0 %v105
    %149 = vmatpush1.msra.mxu0 %v104
    %150 = vmatprep.subr.mxu0 %v107
    %151 = vmatpush1.msra.mxu0 %v106
    %152 = vmatprep.subr.mxu0 %v109
    %153 = vmatpush1.msra.mxu0 %v108
    %154 = vmatprep.subr.mxu0 %v111
    %155 = vmatpush1.msra.mxu0 %v110
    %156 = vmatprep.subr.mxu0 %v113
    %157 = vmatpush1.msra.mxu0 %v112
    %158 = vmatprep.subr.mxu0 %v115
    %159 = vmatpush1.msra.mxu0 %v114
    %160 = vmatprep.subr.mxu0 %v117
    %161 = vmatpush1.msra.mxu0 %v116
    %162 = vmatprep.subr.mxu0 %v119
    %163 = vmatpush1.msra.mxu0 %v118
    %164 = vmatprep.subr.mxu0 0.0
    %165 = vmatpush1.msra.mxu0 0.0
    %166 = vmatprep.subr.mxu0 0.0
    %167 = vmatpush1.msra.mxu0 0.0
    %168 = vmatprep.subr.mxu0 0.0
    %169 = vmatpush1.msra.mxu0 0.0
    %170 = vmatprep.subr.mxu0 0.0
    %171 = vmatpush1.msra.mxu0 0.0
    %172 = vmatprep.subr.mxu0 0.0
    %173 = vmatpush1.msra.mxu0 0.0
    %174 = vmatprep.subr.mxu0 0.0
    %175 = vmatpush1.msra.mxu0 0.0
    %176 = vmatprep.subr.mxu0 0.0
    %177 = vmatpush1.msra.mxu0 0.0
    %178 = vmatprep.subr.mxu0 0.0
    %179 = vmatpush1.msra.mxu0 0.0
    %180 = vmatprep.subr.mxu0 0.0
    %181 = vmatpush1.msra.mxu0 0.0
    %182 = vmatprep.subr.mxu0 0.0
    %183 = vmatpush1.msra.mxu0 0.0
    %184 = vmatprep.subr.mxu0 0.0
    %185 = vmatpush1.msra.mxu0 0.0
    %186 = vmatprep.subr.mxu0 0.0
    %187 = vmatpush1.msra.mxu0 0.0
    %188 = vmatprep.subr.mxu0 0.0
    %189 = vmatpush1.msra.mxu0 0.0
    %190 = vmatprep.subr.mxu0 0.0
    %191 = vmatpush1.msra.mxu0 0.0
    %192 = vmatprep.subr.mxu0 0.0
    %193 = vmatpush1.msra.mxu0 0.0
    %194 = vmatprep.subr.mxu0 0.0
    %195 = vmatpush1.msra.mxu0 0.0
    %196 = vmatprep.mubr.f32.mxu0 0.0
    %197 = vmatmul.mubr.f32.gmra.mrb[0].mxu0 %v86
    %v198 = vpop.f32.mrb[0].mxu0
    %v199 = vadd.f32 %v125, %v198
    %v200 = vpop.f32.mrb[0].mxu0
    %v201 = vadd.f32 %v129, %v200
    %202 = vmatprep.mubr.f32.mxu0 0.0
    %203 = vmatmul.mubr.f32.gmra.mrb[0].mxu0 %v87
    %v204 = vpop.f32.mrb[0].mxu0
    %v205 = vadd.f32 %v125, %v204
    %v206 = vpop.f32.mrb[0].mxu0
    %v207 = vadd.f32 %v129, %v206
    %208 = vdwg.mxu0
    %209 = vst [vmem:[#allocation9] sm:$0xff] %v199
    %210 = vst [vmem:[#allocation9 + $0x8] sm:$0xff] %v201
    %211 = vst [vmem:[#allocation9 + $0x10] sm:$0xff] %v205
    %212 = vst [vmem:[#allocation9 + $0x18] sm:$0xff] %v207
    // Predicated region
    $region34: #{tpu_custom_call.1} parent=1 // pred_check
      _
    $region35: #{tpu_custom_call.1} parent=1 // pred_check_branch
      %214 = sbr.rel (0) target = $region37
    $region36: #{tpu_custom_call.1} parent=1 // pred_region
      %s216 = ssub.s32 512, 512
      %217 = vsyncadd [#allocation5], %s216
      %s218 = sshll.u32 [#allocation9], 4
      %s219 = int_to_ptr.vmem [resolvable:$true] %s218
      %224 = dma.vmem_to_hbm [thread:$0]  %s219, 512, %s4, [#allocation5], 256, 256, 16
    $region37: #{tpu_custom_call.1} parent=1 // pred_fallthru
      _
    // Predicated region
    $region38: #{tpu_custom_call.1} parent=1 // pred_check
      _
    $region39: #{tpu_custom_call.1} parent=1 // pred_check_branch
      %226 = sbr.rel (0) target = $region41
    $region40: #{tpu_custom_call.1} parent=1 // pred_region
      %227 = dma.done [#allocation5], 512
    $region41: #{tpu_custom_call.1} parent=1 // pred_fallthru
      _
    %228 = vsyncpa [#allocation4], 1
    %229 = vsyncpa [#allocation7], 1
    %230 = vsyncpa [#allocation5], 1

</llo_original>
